<compile_context>
chip_gen: v5e
topology: v5e:2x2
jax: 0.10.0
libtpu: 0.0.40
codegen_flags: <defaults>
</compile_context>

<pallas_src>
import functools

import jax
import jax.numpy as jnp
from jax import lax
from jax.experimental import pallas as pl
from jax.experimental.pallas import tpu as pltpu


# ------------------------- in-kernel helpers -------------------------
def _reflect_pad_lanes(x, pad):
    """x: [C, L] -> [C, L + 2*pad]. PyTorch padding_mode='reflect' (edge excluded)."""
    if pad == 0:
        return x
    L = x.shape[1]
    left = [x[:, p:p + 1] for p in range(pad, 0, -1)]          # x[:, pad], ..., x[:, 1]
    right = [x[:, L - 1 - p:L - p] for p in range(1, pad + 1)]  # x[:, L-2], ..., x[:, L-1-pad]
    return jnp.concatenate(left + [x] + right, axis=1)


def _conv1d_relu(x, w_packed, *, K, pad):
    """x: [Cin, L], w_packed: [Cout, K*Cin] (tap-major rows) -> relu(conv1d(x))."""
    L = x.shape[1]
    xp = _reflect_pad_lanes(x, pad)                       # [Cin, L + 2*pad]
    Lout = L + 2 * pad - K + 1
    # im2col: single MXU push with a K*Cin-deep contraction.
    xcol = jnp.concatenate([xp[:, k:k + Lout] for k in range(K)], axis=0)  # [K*Cin, Lout]
    y = jnp.dot(w_packed, xcol, preferred_element_type=jnp.float32)        # [Cout, Lout]
    return jnp.maximum(y, 0.0)


def _decoder_kernel(x_ref, w1_ref, w2_ref, w3_ref, o_ref, *, K, pad):
    # One batch element per grid step; all three conv+ReLU layers fused,
    # intermediates stay in VMEM/vregs, weights resident across the grid.
    h = _conv1d_relu(x_ref[0], w1_ref[...], K=K, pad=pad)   # 128 -> 64
    h = _conv1d_relu(h, w2_ref[...], K=K, pad=pad)          # 64  -> 32
    h = _conv1d_relu(h, w3_ref[...], K=K, pad=pad)          # 32  -> input_size
    o_ref[0] = h.astype(o_ref.dtype)


# ------------------------- wrapper -------------------------
def pack_decoder_weights(params):
    """[Cout, Cin, K] -> [Cout, K*Cin], row layout matching the kernel's im2col.
    Done once, outside the forward pass (hoists the per-call transpose)."""
    return {
        name: jnp.transpose(w, (0, 2, 1)).reshape(w.shape[0], -1)
        for name, w in params.items()
    }


@functools.partial(jax.jit, static_argnames=("kernel_size", "padding"))
def decoder_forward(x, w1p, w2p, w3p, *, kernel_size, padding):
    """x: [B, 128, L] f32; w*p: packed weights -> [B, input_size, Lout]."""
    B, Cin, L = x.shape
    K = kernel_size

    def lout(l):
        return l + 2 * padding - K + 1

    L1 = lout(L)
    L2 = lout(L1)
    L3 = lout(L2)
    C1, C2, C3 = w1p.shape[0], w2p.shape[0], w3p.shape[0]
    assert w1p.shape == (C1, K * Cin)
    assert w2p.shape == (C2, K * C1)
    assert w3p.shape == (C3, K * C2)

    kernel = functools.partial(_decoder_kernel, K=K, pad=padding)
    return pl.pallas_call(
        kernel,
        out_shape=jax.ShapeDtypeStruct((B, C3, L3), x.dtype),
        grid_spec=pltpu.PrefetchScalarGridSpec(
            num_scalar_prefetch=0,
            grid=(B,),
            in_specs=[
                pl.BlockSpec((1, Cin, L), lambda b: (b, 0, 0)),
                # Constant index_maps: weight blocks are DMA'd once and stay
                # resident in VMEM across the whole batch grid.
                pl.BlockSpec((C1, K * Cin), lambda b: (0, 0)),
                pl.BlockSpec((C2, K * C1), lambda b: (0, 0)),
                pl.BlockSpec((C3, K * C2), lambda b: (0, 0)),
            ],
            out_specs=pl.BlockSpec((1, C3, L3), lambda b: (b, 0, 0)),
        ),
        compiler_params=pltpu.CompilerParams(
            # Batch elements are independent -> shards across v7x's 2 TensorCores.
            dimension_semantics=("parallel",),
        ),
    )(x, w1p, w2p, w3p)


# ------------------------- pure-JAX reference -------------------------
def _conv1d_relu_ref(x, w, *, padding):
    x_pad = jnp.pad(x, ((0, 0), (0, 0), (padding, padding)), mode="reflect")
    y = lax.conv_general_dilated(
        x_pad, w, window_strides=(1,), padding="VALID",
        dimension_numbers=("NCH", "OIH", "NCH"),
    )
    return jnp.maximum(y, 0.0)


def decoder_forward_ref(x, params, *, padding):
    h = _conv1d_relu_ref(x, params["w1"], padding=padding)
    h = _conv1d_relu_ref(h, params["w2"], padding=padding)
    h = _conv1d_relu_ref(h, params["w3"], padding=padding)
    return h


# ------------------------- parameter init -------------------------
def init_decoder_params(key, *, input_size, kernel_size):
    # Mirrors PyTorch Conv1d default init bound (1/sqrt(Cin*K)), deterministic JAX RNG.
    shapes = [
        (64, 128, kernel_size),
        (32, 64, kernel_size),
        (input_size, 32, kernel_size),
    ]
    keys = jax.random.split(key, len(shapes))
    params = {}
    for i, (shape, k) in enumerate(zip(shapes, keys), start=1):
        bound = 1.0 / (shape[1] * shape[2]) ** 0.5
        params[f"w{i}"] = jax.random.uniform(
            k, shape, jnp.float32, minval=-bound, maxval=bound
        )
    return params


if __name__ == "__main__":
    args = {"kernel_size": 3, "padding": 1, "input_size": 4}

    key = jax.random.PRNGKey(0)
    k_w, k_x = jax.random.split(key)
    params = init_decoder_params(
        k_w, input_size=args["input_size"], kernel_size=args["kernel_size"]
    )
    packed = pack_decoder_weights(params)   # one-time weight repack, outside the fwd

    B, Cin, L = 2, 128, 16                  # Decoder expects 128 input channels
    x = jax.random.normal(k_x, (B, Cin, L), jnp.float32)

    out = decoder_forward(
        x, packed["w1"], packed["w2"], packed["w3"],
        kernel_size=args["kernel_size"], padding=args["padding"],
    )
    out = jax.block_until_ready(out)

    ref = decoder_forward_ref(x, params, padding=args["padding"])
    assert out.shape == (B, args["input_size"], L), out.shape
    assert jnp.allclose(out, ref, atol=1e-5, rtol=1e-5), float(
        jnp.max(jnp.abs(out - ref))
    )
    print("KERNEL_OK")
</pallas_src>

<mosaic_0001>
module attributes {stable_mosaic.version = 11 : i64} {
  func.func @_decoder_kernel(%arg0: i32, %arg1: memref<1x128x16xf32, #tpu.memory_space<vmem>>, %arg2: memref<64x384xf32, #tpu.memory_space<vmem>>, %arg3: memref<32x192xf32, #tpu.memory_space<vmem>>, %arg4: memref<4x96xf32, #tpu.memory_space<vmem>>, %arg5: memref<1x4x16xf32, #tpu.memory_space<vmem>>) attributes {dimension_semantics = [#tpu.dimension_semantics<parallel>], iteration_bounds = array<i64: 2>, scalar_prefetch = 0 : i64, scratch_operands = 0 : i64, tpu.core_type = #tpu.core_type<tc>, window_params = [{transform_indices = @transform_0, window_bounds = array<i64: 1, 128, 16>}, {pipeline_mode = #tpu.pipeline_mode<synchronous>, transform_indices = @transform_1, window_bounds = array<i64: 64, 384>}, {pipeline_mode = #tpu.pipeline_mode<synchronous>, transform_indices = @transform_2, window_bounds = array<i64: 32, 192>}, {pipeline_mode = #tpu.pipeline_mode<synchronous>, transform_indices = @transform_3, window_bounds = array<i64: 4, 96>}, {transform_indices = @transform_4, window_bounds = array<i64: 1, 4, 16>}]} {
    %c0 = arith.constant 0 : index
    %c0_0 = arith.constant 0 : index
    %c0_1 = arith.constant 0 : index
    %0 = vector.load %arg1[%c0, %c0_0, %c0_1] : memref<1x128x16xf32, #tpu.memory_space<vmem>>, vector<1x128x16xf32>
    %1 = vector.shape_cast %0 : vector<1x128x16xf32> to vector<128x16xf32>
    %c0_2 = arith.constant 0 : index
    %c0_3 = arith.constant 0 : index
    %2 = vector.load %arg2[%c0_2, %c0_3] : memref<64x384xf32, #tpu.memory_space<vmem>>, vector<64x384xf32>
    %3 = vector.extract_strided_slice %1 {offsets = [0, 1], sizes = [128, 1], strides = [1, 1]} : vector<128x16xf32> to vector<128x1xf32>
    %4 = vector.extract_strided_slice %1 {offsets = [0, 14], sizes = [128, 1], strides = [1, 1]} : vector<128x16xf32> to vector<128x1xf32>
    %5 = tpu.concatenate %3, %1, %4 in 1 : vector<128x1xf32>, vector<128x16xf32>, vector<128x1xf32> -> vector<128x18xf32>
    %6 = vector.extract_strided_slice %5 {offsets = [0, 0], sizes = [128, 16], strides = [1, 1]} : vector<128x18xf32> to vector<128x16xf32>
    %7 = vector.extract_strided_slice %5 {offsets = [0, 1], sizes = [128, 16], strides = [1, 1]} : vector<128x18xf32> to vector<128x16xf32>
    %8 = vector.extract_strided_slice %5 {offsets = [0, 2], sizes = [128, 16], strides = [1, 1]} : vector<128x18xf32> to vector<128x16xf32>
    %9 = tpu.concatenate %6, %7, %8 in 0 : vector<128x16xf32>, vector<128x16xf32>, vector<128x16xf32> -> vector<384x16xf32>
    %cst = arith.constant dense<0.000000e+00> : vector<64x16xf32>
    %10 = tpu.matmul %2, %9, %cst {dimension_numbers = #tpu.dot_dimension_numbers<[1], [0], [0], [1], [0, 0, 1, 1], [], []>} : vector<64x384xf32>, vector<384x16xf32>, vector<64x16xf32> -> vector<64x16xf32>
    %cst_4 = arith.constant 0.000000e+00 : f32
    %11 = vector.broadcast %cst_4 : f32 to vector<64x16xf32>
    %12 = arith.maximumf %10, %11 : vector<64x16xf32>
    %c0_5 = arith.constant 0 : index
    %c0_6 = arith.constant 0 : index
    %13 = vector.load %arg3[%c0_5, %c0_6] : memref<32x192xf32, #tpu.memory_space<vmem>>, vector<32x192xf32>
    %14 = vector.extract_strided_slice %12 {offsets = [0, 1], sizes = [64, 1], strides = [1, 1]} : vector<64x16xf32> to vector<64x1xf32>
    %15 = vector.extract_strided_slice %12 {offsets = [0, 14], sizes = [64, 1], strides = [1, 1]} : vector<64x16xf32> to vector<64x1xf32>
    %16 = tpu.concatenate %14, %12, %15 in 1 : vector<64x1xf32>, vector<64x16xf32>, vector<64x1xf32> -> vector<64x18xf32>
    %17 = vector.extract_strided_slice %16 {offsets = [0, 0], sizes = [64, 16], strides = [1, 1]} : vector<64x18xf32> to vector<64x16xf32>
    %18 = vector.extract_strided_slice %16 {offsets = [0, 1], sizes = [64, 16], strides = [1, 1]} : vector<64x18xf32> to vector<64x16xf32>
    %19 = vector.extract_strided_slice %16 {offsets = [0, 2], sizes = [64, 16], strides = [1, 1]} : vector<64x18xf32> to vector<64x16xf32>
    %20 = tpu.concatenate %17, %18, %19 in 0 : vector<64x16xf32>, vector<64x16xf32>, vector<64x16xf32> -> vector<192x16xf32>
    %cst_7 = arith.constant dense<0.000000e+00> : vector<32x16xf32>
    %21 = tpu.matmul %13, %20, %cst_7 {dimension_numbers = #tpu.dot_dimension_numbers<[1], [0], [0], [1], [0, 0, 1, 1], [], []>} : vector<32x192xf32>, vector<192x16xf32>, vector<32x16xf32> -> vector<32x16xf32>
    %cst_8 = arith.constant 0.000000e+00 : f32
    %22 = vector.broadcast %cst_8 : f32 to vector<32x16xf32>
    %23 = arith.maximumf %21, %22 : vector<32x16xf32>
    %c0_9 = arith.constant 0 : index
    %c0_10 = arith.constant 0 : index
    %24 = vector.load %arg4[%c0_9, %c0_10] : memref<4x96xf32, #tpu.memory_space<vmem>>, vector<4x96xf32>
    %25 = vector.extract_strided_slice %23 {offsets = [0, 1], sizes = [32, 1], strides = [1, 1]} : vector<32x16xf32> to vector<32x1xf32>
    %26 = vector.extract_strided_slice %23 {offsets = [0, 14], sizes = [32, 1], strides = [1, 1]} : vector<32x16xf32> to vector<32x1xf32>
    %27 = tpu.concatenate %25, %23, %26 in 1 : vector<32x1xf32>, vector<32x16xf32>, vector<32x1xf32> -> vector<32x18xf32>
    %28 = vector.extract_strided_slice %27 {offsets = [0, 0], sizes = [32, 16], strides = [1, 1]} : vector<32x18xf32> to vector<32x16xf32>
    %29 = vector.extract_strided_slice %27 {offsets = [0, 1], sizes = [32, 16], strides = [1, 1]} : vector<32x18xf32> to vector<32x16xf32>
    %30 = vector.extract_strided_slice %27 {offsets = [0, 2], sizes = [32, 16], strides = [1, 1]} : vector<32x18xf32> to vector<32x16xf32>
    %31 = tpu.concatenate %28, %29, %30 in 0 : vector<32x16xf32>, vector<32x16xf32>, vector<32x16xf32> -> vector<96x16xf32>
    %cst_11 = arith.constant dense<0.000000e+00> : vector<4x16xf32>
    %32 = tpu.matmul %24, %31, %cst_11 {dimension_numbers = #tpu.dot_dimension_numbers<[1], [0], [0], [1], [0, 0, 1, 1], [], []>} : vector<4x96xf32>, vector<96x16xf32>, vector<4x16xf32> -> vector<4x16xf32>
    %cst_12 = arith.constant 0.000000e+00 : f32
    %33 = vector.broadcast %cst_12 : f32 to vector<4x16xf32>
    %34 = arith.maximumf %32, %33 : vector<4x16xf32>
    %c0_13 = arith.constant 0 : index
    %c0_14 = arith.constant 0 : index
    %c0_15 = arith.constant 0 : index
    %35 = vector.load %arg5[%c0_13, %c0_14, %c0_15] : memref<1x4x16xf32, #tpu.memory_space<vmem>>, vector<1x4x16xf32>
    %36 = vector.shape_cast %35 : vector<1x4x16xf32> to vector<4x16xf32>
    %37 = vector.shape_cast %34 : vector<4x16xf32> to vector<1x4x16xf32>
    tpu.vector_store %arg5[%c0_13, %c0_14, %c0_15], %37 {strides = array<i32>} : memref<1x4x16xf32, #tpu.memory_space<vmem>>, vector<1x4x16xf32>,
    return
  }
  func.func @transform_0(%arg0: i32) -> (i32, i32, i32) {
    %c0_i32 = arith.constant 0 : i32
    %c0_i32_0 = arith.constant 0 : i32
    %c0_i32_1 = arith.constant 0 : i32
    return %arg0, %c0_i32, %c0_i32_0 : i32, i32, i32
  }
  func.func @transform_1(%arg0: i32) -> (i32, i32) {
    %c0_i32 = arith.constant 0 : i32
    %c0_i32_0 = arith.constant 0 : i32
    %c0_i32_1 = arith.constant 0 : i32
    return %c0_i32, %c0_i32_0 : i32, i32
  }
  func.func @transform_2(%arg0: i32) -> (i32, i32) {
    %c0_i32 = arith.constant 0 : i32
    %c0_i32_0 = arith.constant 0 : i32
    %c0_i32_1 = arith.constant 0 : i32
    return %c0_i32, %c0_i32_0 : i32, i32
  }
  func.func @transform_3(%arg0: i32) -> (i32, i32) {
    %c0_i32 = arith.constant 0 : i32
    %c0_i32_0 = arith.constant 0 : i32
    %c0_i32_1 = arith.constant 0 : i32
    return %c0_i32, %c0_i32_0 : i32, i32
  }
  func.func @transform_4(%arg0: i32) -> (i32, i32, i32) {
    %c0_i32 = arith.constant 0 : i32
    %c0_i32_0 = arith.constant 0 : i32
    %c0_i32_1 = arith.constant 0 : i32
    return %arg0, %c0_i32, %c0_i32_0 : i32, i32, i32
  }
}

</mosaic_0001>

<llo_original>
// kernel: decoder_forward.1
$region0: #{decoder_forward.1}
  #allocation0 [shape = 'u32[]', space=smem, size = 0x4, offset = 0x4, fixed_abs, tag = 'smem constant byte address 0x4 - core index']
  #allocation1 [shape = 'u32[72,128]{1,0:T(1,128)}', space=vmem, size = 0x9000, scoped, tag = 'internal scratch']
  %s0 = inlined_call_operand.vmem [shape: f32[2,128,16], index: 0, kind: input, shape index: {}]
  %s1 = inlined_call_operand.vmem [shape: f32[64,384], index: 1, kind: input, shape index: {}]
  %s2 = inlined_call_operand.vmem [shape: f32[32,192], index: 2, kind: input, shape index: {}]
  %s3 = inlined_call_operand.vmem [shape: f32[4,96], index: 3, kind: input, shape index: {}]
  %s4 = inlined_call_operand.hbm [shape: f32[2,4,16], index: 4, kind: output, shape index: {}]
  %s5 = sld [smem:[#allocation0]]
  $region49: #{decoder_forward.1} parent=0
    _
  %s7 = ssub.s32 1, %s5
  %s8 = scalar_select 0, %s7, %s5
  $region1: #{decoder_forward.1} parent=0
    #allocation2 [shape = 'u8[4096]{0}', space=vmem, size = 0x1000, scoped, tag = 'output window, operand 0']
    #allocation3 [shape = 's32[2]{0}', space=sflag, size = 0x8, scoped, tag = 'scoped memory for decoder_forward.1']
    %9 = vsyncpa [#allocation3], 0
    %s10 = scalar_lea.sflag [#allocation3], 1
    %11 = vsyncpa %s10, 0
    loop: start=0, step=1, limit=4
    $region2: #{decoder_forward.1} parent=1 // loop_pre_header
      _
    $region3: #{decoder_forward.1} parent=1 // loop_header
      %s13 = sphi 0, %s17
      %p14 = scmp.ge.s32.totalorder %s13, 4
      %s23 = sphi 0, %s25
      %s26 = sphi 0, %s23
      %s27 = sphi 0, %s26
      %s43 = sphi 0, %s27
      %s47 = sphi 0, %s47
      %s49 = sphi 0, %s47
      %s50 = sphi 0, %s49
      %s64 = sphi 0, %s50
      %s68 = sphi 0, %s68
      %s70 = sphi 0, %s68
      %s71 = sphi 0, %s70
      %s85 = sphi 0, %s71
      %s89 = sphi 0, %s89
      %s91 = sphi 0, %s89
      %s92 = sphi 0, %s91
      %s106 = sphi 0, %s92
      %s112 = sphi 0, %s114
      %s115 = sphi 0, %s112
      %s116 = sphi 0, %s115
      %s132 = sphi 0, %s116
    $region4: #{decoder_forward.1} parent=1 // loop_header_branch
      %16 = sbr.rel (%p14) target = $region8
    $region5: #{decoder_forward.1} parent=1 // loop_body
      %s18 = ssub.s32 %s13, 1
      %s19 = ssub.s32 %s13, 2
      %s20 = sadd.s32 %s13, 1
      %s21 = ssub.s32 %s13, %s20
      %p22 = scmp.eq.s32.totalorder %s21, 0
      %s24 = sadd.s32 %s23, 1
      %s25 = scalar_select %p22, %s23, %s24
      %p28 = pneg %p22
      %p29 = scmp.eq.s32.totalorder %s13, 1
      %p30 = por %p28, %p29
      %p31 = scmp.ne.s32.totalorder %s23, %s26
      %p32 = scmp.eq.s32.totalorder %s13, 0
      %p33 = por %p31, %p32
      %p34 = scmp.ne.s32.totalorder %s23, %s26
      %p35 = scmp.eq.s32.totalorder %s18, 1
      %p36 = por %p34, %p35
      %p37 = scmp.ne.s32.totalorder %s26, %s27
      %p38 = scmp.eq.s32.totalorder %s18, 0
      %p39 = por %p37, %p38
      %p40 = scmp.ne.s32.totalorder %s26, %s27
      %p41 = scmp.eq.s32.totalorder %s19, 1
      %p42 = por %p40, %p41
      %p44 = scmp.ne.s32.totalorder %s27, %s43
      %p45 = scmp.eq.s32.totalorder %s19, 0
      %p46 = por %p44, %p45
      %s48 = sadd.s32 %s47, 1
      %p51 = scmp.eq.s32.totalorder %s13, 1
      %p52 = scmp.ne.s32.totalorder %s47, %s49
      %p53 = scmp.eq.s32.totalorder %s13, 0
      %p54 = por %p52, %p53
      %p55 = scmp.ne.s32.totalorder %s47, %s49
      %p56 = scmp.eq.s32.totalorder %s18, 1
      %p57 = por %p55, %p56
      %p58 = scmp.ne.s32.totalorder %s49, %s50
      %p59 = scmp.eq.s32.totalorder %s18, 0
      %p60 = por %p58, %p59
      %p61 = scmp.ne.s32.totalorder %s49, %s50
      %p62 = scmp.eq.s32.totalorder %s19, 1
      %p63 = por %p61, %p62
      %p65 = scmp.ne.s32.totalorder %s50, %s64
      %p66 = scmp.eq.s32.totalorder %s19, 0
      %p67 = por %p65, %p66
      %s69 = sadd.s32 %s68, 1
      %p72 = scmp.eq.s32.totalorder %s13, 1
      %p73 = scmp.ne.s32.totalorder %s68, %s70
      %p74 = scmp.eq.s32.totalorder %s13, 0
      %p75 = por %p73, %p74
      %p76 = scmp.ne.s32.totalorder %s68, %s70
      %p77 = scmp.eq.s32.totalorder %s18, 1
      %p78 = por %p76, %p77
      %p79 = scmp.ne.s32.totalorder %s70, %s71
      %p80 = scmp.eq.s32.totalorder %s18, 0
      %p81 = por %p79, %p80
      %p82 = scmp.ne.s32.totalorder %s70, %s71
      %p83 = scmp.eq.s32.totalorder %s19, 1
      %p84 = por %p82, %p83
      %p86 = scmp.ne.s32.totalorder %s71, %s85
      %p87 = scmp.eq.s32.totalorder %s19, 0
      %p88 = por %p86, %p87
      %s90 = sadd.s32 %s89, 1
      %p93 = scmp.eq.s32.totalorder %s13, 1
      %p94 = scmp.ne.s32.totalorder %s89, %s91
      %p95 = scmp.eq.s32.totalorder %s13, 0
      %p96 = por %p94, %p95
      %p97 = scmp.ne.s32.totalorder %s89, %s91
      %p98 = scmp.eq.s32.totalorder %s18, 1
      %p99 = por %p97, %p98
      %p100 = scmp.ne.s32.totalorder %s91, %s92
      %p101 = scmp.eq.s32.totalorder %s18, 0
      %p102 = por %p100, %p101
      %p103 = scmp.ne.s32.totalorder %s91, %s92
      %p104 = scmp.eq.s32.totalorder %s19, 1
      %p105 = por %p103, %p104
      %p107 = scmp.ne.s32.totalorder %s92, %s106
      %p108 = scmp.eq.s32.totalorder %s19, 0
      %p109 = por %p107, %p108
      %s110 = ssub.s32 %s13, %s20
      %p111 = scmp.eq.s32.totalorder %s110, 0
      %s113 = sadd.s32 %s112, 1
      %s114 = scalar_select %p111, %s112, %s113
      %p117 = pneg %p111
      %p118 = scmp.eq.s32.totalorder %s13, 1
      %p119 = por %p117, %p118
      %p120 = scmp.ne.s32.totalorder %s112, %s115
      %p121 = scmp.eq.s32.totalorder %s13, 0
      %p122 = por %p120, %p121
      %p123 = scmp.ne.s32.totalorder %s112, %s115
      %p124 = scmp.eq.s32.totalorder %s18, 1
      %p125 = por %p123, %p124
      %p126 = scmp.ne.s32.totalorder %s115, %s116
      %p127 = scmp.eq.s32.totalorder %s18, 0
      %p128 = por %p126, %p127
      %p129 = scmp.ne.s32.totalorder %s115, %s116
      %p130 = scmp.eq.s32.totalorder %s19, 1
      %p131 = por %p129, %p130
      %p133 = scmp.ne.s32.totalorder %s116, %s132
      %p134 = scmp.eq.s32.totalorder %s19, 0
      %p135 = por %p133, %p134
      %p136 = scmp.le.s32.totalorder 1, %s13
      %p137 = scmp.lt.s32.totalorder %s13, 3
      %p138 = pnand %p136, %p137
      %p139 = pneg %p138
      // Predicated region
      $region9: #{decoder_forward.1} parent=5 // pred_check
        _
      $region10: #{decoder_forward.1} parent=5 // pred_check_branch
        %141 = sbr.rel (%p138) target = $region12
      $region11: #{decoder_forward.1} parent=5 // pred_region
        %s142 = ssub.s32 %s13, 1
        // Predicated region
        $region13: #{decoder_forward.1} parent=11 // pred_check
          %p143 = pneg %p60
        $region14: #{decoder_forward.1} parent=11 // pred_check_branch
          %145 = sbr.rel (%p143) target = $region16
        $region15: #{decoder_forward.1} parent=11 // pred_region
          _
        $region16: #{decoder_forward.1} parent=11 // pred_fallthru
          _
        // Predicated region
        $region17: #{decoder_forward.1} parent=11 // pred_check
          %p146 = pneg %p81
        $region18: #{decoder_forward.1} parent=11 // pred_check_branch
          %148 = sbr.rel (%p146) target = $region20
        $region19: #{decoder_forward.1} parent=11 // pred_region
          _
        $region20: #{decoder_forward.1} parent=11 // pred_fallthru
          _
        // Predicated region
        $region21: #{decoder_forward.1} parent=11 // pred_check
          %p149 = pneg %p102
        $region22: #{decoder_forward.1} parent=11 // pred_check_branch
          %151 = sbr.rel (%p149) target = $region24
        $region23: #{decoder_forward.1} parent=11 // pred_region
          _
        $region24: #{decoder_forward.1} parent=11 // pred_fallthru
          _
      $region12: #{decoder_forward.1} parent=5 // pred_fallthru
        _
      %p152 = scmp.lt.s32.totalorder %s13, 2
      // Predicated region
      $region25: #{decoder_forward.1} parent=5 // pred_check
        %p153 = pneg %p152
      $region26: #{decoder_forward.1} parent=5 // pred_check_branch
        %155 = sbr.rel (%p153) target = $region28
      $region27: #{decoder_forward.1} parent=5 // pred_region
        // Predicated region
        $region29: #{decoder_forward.1} parent=27 // pred_check
          %p156 = pneg %p33
        $region30: #{decoder_forward.1} parent=27 // pred_check_branch
          %158 = sbr.rel (%p156) target = $region32
        $region31: #{decoder_forward.1} parent=27 // pred_region
          %p159 = scmp.lt.s32.totalorder %s13, 1
          %s160 = scalar_select %p159, %s13, 1
          %s161 = smul.addr %s160, 16
          %s162 = smul.addr %s161, 8
          %s163 = scalar_lea.vmem %s0, %s162
        $region32: #{decoder_forward.1} parent=27 // pred_fallthru
          _
      $region28: #{decoder_forward.1} parent=5 // pred_fallthru
        _
      %p164 = scmp.le.s32.totalorder 1, %s13
      %p165 = scmp.lt.s32.totalorder %s13, 3
      %p166 = pnand %p164, %p165
      %p167 = pneg %p166
      // Predicated region
      $region33: #{decoder_forward.1} parent=5 // pred_check
        _
      $region34: #{decoder_forward.1} parent=5 // pred_check_branch
        %169 = sbr.rel (%p166) target = $region36
      $region35: #{decoder_forward.1} parent=5 // pred_region
        %s170 = ssub.s32 %s13, 1
        %p171 = scmp.lt.s32.totalorder %s18, 1
        %s172 = scalar_select %p171, %s18, 1
        %s173 = smul.addr %s172, 16
        %s174 = smul.addr %s173, 8
        %s175 = scalar_lea.vmem %s0, %s174
        %p176 = pneg %p39
        %p177 = pneg %p36
        %p178 = pneg %p60
        %p179 = pneg %p57
        %p180 = pneg %p81
        %p181 = pneg %p78
        %p182 = pneg %p102
        %p183 = pneg %p99
        %p184 = pneg %p128
        %p185 = pneg %p125
        %s186 = sand.u32 %s115, 1
        %s187 = scalar_lea.sflag [#allocation3], %s186
        %s188 = sand.u32 %s115, 1
        %s189 = smul.addr %s188, 4
        %s190 = scalar_lea.vmem [#allocation2], %s189
        %p191 = scmp.lt.s32.totalorder %s18, 1
        %s192 = scalar_select %p191, %s18, 1
        %s193 = smul.addr %s192, 16
        %s194 = smul.addr %s193, 8
        %s195 = scalar_lea.vmem %s0, %s194
        %v196 = vld [vmem:[%s195] sm:$0xff]
        %v197 = vld [vmem:[%s195 + $0x8] sm:$0xff]
        %v198 = vld [vmem:[%s195 + $0x10] sm:$0xff]
        %v199 = vld [vmem:[%s195 + $0x18] sm:$0xff]
        %v200 = vld [vmem:[%s195 + $0x20] sm:$0xff]
        %v201 = vld [vmem:[%s195 + $0x28] sm:$0xff]
        %v202 = vld [vmem:[%s195 + $0x30] sm:$0xff]
        %v203 = vld [vmem:[%s195 + $0x38] sm:$0xff]
        %v204 = vld [vmem:[%s195 + $0x40] sm:$0xff]
        %v205 = vld [vmem:[%s195 + $0x48] sm:$0xff]
        %v206 = vld [vmem:[%s195 + $0x50] sm:$0xff]
        %v207 = vld [vmem:[%s195 + $0x58] sm:$0xff]
        %v208 = vld [vmem:[%s195 + $0x60] sm:$0xff]
        %v209 = vld [vmem:[%s195 + $0x68] sm:$0xff]
        %v210 = vld [vmem:[%s195 + $0x70] sm:$0xff]
        %v211 = vld [vmem:[%s195 + $0x78] sm:$0xff]
        %v212 = vld [vmem:[%s1] sm:$0xff]
        %v213 = vld [vmem:[%s1 + $0x8] sm:$0xff]
        %v214 = vld [vmem:[%s1 + $0x10] sm:$0xff]
        %v215 = vld [vmem:[%s1 + $0x18] sm:$0xff]
        %v216 = vld [vmem:[%s1 + $0x20] sm:$0xff]
        %v217 = vld [vmem:[%s1 + $0x28] sm:$0xff]
        %v218 = vld [vmem:[%s1 + $0x30] sm:$0xff]
        %v219 = vld [vmem:[%s1 + $0x38] sm:$0xff]
        %v220 = vld [vmem:[%s1 + $0x40] sm:$0xff]
        %v221 = vld [vmem:[%s1 + $0x48] sm:$0xff]
        %v222 = vld [vmem:[%s1 + $0x50] sm:$0xff]
        %v223 = vld [vmem:[%s1 + $0x58] sm:$0xff]
        %v224 = vld [vmem:[%s1 + $0x60] sm:$0xff]
        %v225 = vld [vmem:[%s1 + $0x68] sm:$0xff]
        %v226 = vld [vmem:[%s1 + $0x70] sm:$0xff]
        %v227 = vld [vmem:[%s1 + $0x78] sm:$0xff]
        %v228 = vld [vmem:[%s1 + $0x80] sm:$0xff]
        %v229 = vld [vmem:[%s1 + $0x88] sm:$0xff]
        %v230 = vld [vmem:[%s1 + $0x90] sm:$0xff]
        %v231 = vld [vmem:[%s1 + $0x98] sm:$0xff]
        %v232 = vld [vmem:[%s1 + $0xa0] sm:$0xff]
        %v233 = vld [vmem:[%s1 + $0xa8] sm:$0xff]
        %v234 = vld [vmem:[%s1 + $0xb0] sm:$0xff]
        %v235 = vld [vmem:[%s1 + $0xb8] sm:$0xff]
        %252 = vrot.lane.b32.xlu0 %v196, 127
        %v253 = vpop.permute.xlu0 %252
        %254 = vrot.lane.b32.xlu0 %v197, 127
        %v255 = vpop.permute.xlu0 %254
        %256 = vrot.lane.b32.xlu0 %v198, 127
        %v257 = vpop.permute.xlu0 %256
        %258 = vrot.lane.b32.xlu0 %v199, 127
        %v259 = vpop.permute.xlu0 %258
        %260 = vrot.lane.b32.xlu0 %v200, 127
        %v261 = vpop.permute.xlu0 %260
        %262 = vrot.lane.b32.xlu0 %v201, 127
        %v263 = vpop.permute.xlu0 %262
        %264 = vrot.lane.b32.xlu0 %v202, 127
        %v265 = vpop.permute.xlu0 %264
        %266 = vrot.lane.b32.xlu0 %v203, 127
        %v267 = vpop.permute.xlu0 %266
        %268 = vrot.lane.b32.xlu0 %v204, 127
        %v269 = vpop.permute.xlu0 %268
        %270 = vrot.lane.b32.xlu0 %v205, 127
        %v271 = vpop.permute.xlu0 %270
        %272 = vrot.lane.b32.xlu0 %v206, 127
        %v273 = vpop.permute.xlu0 %272
        %274 = vrot.lane.b32.xlu0 %v207, 127
        %v275 = vpop.permute.xlu0 %274
        %276 = vrot.lane.b32.xlu0 %v208, 127
        %v277 = vpop.permute.xlu0 %276
        %278 = vrot.lane.b32.xlu0 %v209, 127
        %v279 = vpop.permute.xlu0 %278
        %280 = vrot.lane.b32.xlu0 %v210, 127
        %v281 = vpop.permute.xlu0 %280
        %282 = vrot.lane.b32.xlu0 %v211, 127
        %v283 = vpop.permute.xlu0 %282
        %300 = vrot.lane.b32.xlu0 %v196, 1
        %v301 = vpop.permute.xlu0 %300
        %302 = vrot.lane.b32.xlu0 %v197, 1
        %v303 = vpop.permute.xlu0 %302
        %304 = vrot.lane.b32.xlu0 %v198, 1
        %v305 = vpop.permute.xlu0 %304
        %306 = vrot.lane.b32.xlu0 %v199, 1
        %v307 = vpop.permute.xlu0 %306
        %308 = vrot.lane.b32.xlu0 %v200, 1
        %v309 = vpop.permute.xlu0 %308
        %310 = vrot.lane.b32.xlu0 %v201, 1
        %v311 = vpop.permute.xlu0 %310
        %312 = vrot.lane.b32.xlu0 %v202, 1
        %v313 = vpop.permute.xlu0 %312
        %314 = vrot.lane.b32.xlu0 %v203, 1
        %v315 = vpop.permute.xlu0 %314
        %316 = vrot.lane.b32.xlu0 %v204, 1
        %v317 = vpop.permute.xlu0 %316
        %318 = vrot.lane.b32.xlu0 %v205, 1
        %v319 = vpop.permute.xlu0 %318
        %320 = vrot.lane.b32.xlu0 %v206, 1
        %v321 = vpop.permute.xlu0 %320
        %322 = vrot.lane.b32.xlu0 %v207, 1
        %v323 = vpop.permute.xlu0 %322
        %324 = vrot.lane.b32.xlu0 %v208, 1
        %v325 = vpop.permute.xlu0 %324
        %326 = vrot.lane.b32.xlu0 %v209, 1
        %v327 = vpop.permute.xlu0 %326
        %328 = vrot.lane.b32.xlu0 %v210, 1
        %v329 = vpop.permute.xlu0 %328
        %330 = vrot.lane.b32.xlu0 %v211, 1
        %v331 = vpop.permute.xlu0 %330
        %348 = vrot.lane.b32.xlu0 %v196, 3
        %v349 = vpop.permute.xlu0 %348
        %350 = vrot.lane.b32.xlu0 %v197, 3
        %v351 = vpop.permute.xlu0 %350
        %352 = vrot.lane.b32.xlu0 %v198, 3
        %v353 = vpop.permute.xlu0 %352
        %354 = vrot.lane.b32.xlu0 %v199, 3
        %v355 = vpop.permute.xlu0 %354
        %356 = vrot.lane.b32.xlu0 %v200, 3
        %v357 = vpop.permute.xlu0 %356
        %358 = vrot.lane.b32.xlu0 %v201, 3
        %v359 = vpop.permute.xlu0 %358
        %360 = vrot.lane.b32.xlu0 %v202, 3
        %v361 = vpop.permute.xlu0 %360
        %362 = vrot.lane.b32.xlu0 %v203, 3
        %v363 = vpop.permute.xlu0 %362
        %364 = vrot.lane.b32.xlu0 %v204, 3
        %v365 = vpop.permute.xlu0 %364
        %366 = vrot.lane.b32.xlu0 %v205, 3
        %v367 = vpop.permute.xlu0 %366
        %368 = vrot.lane.b32.xlu0 %v206, 3
        %v369 = vpop.permute.xlu0 %368
        %370 = vrot.lane.b32.xlu0 %v207, 3
        %v371 = vpop.permute.xlu0 %370
        %372 = vrot.lane.b32.xlu0 %v208, 3
        %v373 = vpop.permute.xlu0 %372
        %374 = vrot.lane.b32.xlu0 %v209, 3
        %v375 = vpop.permute.xlu0 %374
        %376 = vrot.lane.b32.xlu0 %v210, 3
        %v377 = vpop.permute.xlu0 %376
        %378 = vrot.lane.b32.xlu0 %v211, 3
        %v379 = vpop.permute.xlu0 %378
        %vm396 = vcmask 7168
        %v397 = vsel %vm396, %v253, %v301
        %v398 = vsel %vm396, %v255, %v303
        %v399 = vsel %vm396, %v257, %v305
        %v400 = vsel %vm396, %v259, %v307
        %v401 = vsel %vm396, %v261, %v309
        %v402 = vsel %vm396, %v263, %v311
        %v403 = vsel %vm396, %v265, %v313
        %v404 = vsel %vm396, %v267, %v315
        %v405 = vsel %vm396, %v269, %v317
        %v406 = vsel %vm396, %v271, %v319
        %v407 = vsel %vm396, %v273, %v321
        %v408 = vsel %vm396, %v275, %v323
        %v409 = vsel %vm396, %v277, %v325
        %v410 = vsel %vm396, %v279, %v327
        %v411 = vsel %vm396, %v281, %v329
        %v412 = vsel %vm396, %v283, %v331
        %vm413 = vcmask 138240
        %v414 = vsel %vm413, %v397, %v349
        %v415 = vsel %vm413, %v398, %v351
        %v416 = vsel %vm413, %v399, %v353
        %v417 = vsel %vm413, %v400, %v355
        %v418 = vsel %vm413, %v401, %v357
        %v419 = vsel %vm413, %v402, %v359
        %v420 = vsel %vm413, %v403, %v361
        %v421 = vsel %vm413, %v404, %v363
        %v422 = vsel %vm413, %v405, %v365
        %v423 = vsel %vm413, %v406, %v367
        %v424 = vsel %vm413, %v407, %v369
        %v425 = vsel %vm413, %v408, %v371
        %v426 = vsel %vm413, %v409, %v373
        %v427 = vsel %vm413, %v410, %v375
        %v428 = vsel %vm413, %v411, %v377
        %v429 = vsel %vm413, %v412, %v379
        %446 = vrot.lane.b32.xlu0 %v414, 127
        %v447 = vpop.permute.xlu0 %446
        %448 = vrot.lane.b32.xlu0 %v415, 127
        %v449 = vpop.permute.xlu0 %448
        %450 = vrot.lane.b32.xlu0 %v416, 127
        %v451 = vpop.permute.xlu0 %450
        %452 = vrot.lane.b32.xlu0 %v417, 127
        %v453 = vpop.permute.xlu0 %452
        %454 = vrot.lane.b32.xlu0 %v418, 127
        %v455 = vpop.permute.xlu0 %454
        %456 = vrot.lane.b32.xlu0 %v419, 127
        %v457 = vpop.permute.xlu0 %456
        %458 = vrot.lane.b32.xlu0 %v420, 127
        %v459 = vpop.permute.xlu0 %458
        %460 = vrot.lane.b32.xlu0 %v421, 127
        %v461 = vpop.permute.xlu0 %460
        %462 = vrot.lane.b32.xlu0 %v422, 127
        %v463 = vpop.permute.xlu0 %462
        %464 = vrot.lane.b32.xlu0 %v423, 127
        %v465 = vpop.permute.xlu0 %464
        %466 = vrot.lane.b32.xlu0 %v424, 127
        %v467 = vpop.permute.xlu0 %466
        %468 = vrot.lane.b32.xlu0 %v425, 127
        %v469 = vpop.permute.xlu0 %468
        %470 = vrot.lane.b32.xlu0 %v426, 127
        %v471 = vpop.permute.xlu0 %470
        %472 = vrot.lane.b32.xlu0 %v427, 127
        %v473 = vpop.permute.xlu0 %472
        %474 = vrot.lane.b32.xlu0 %v428, 127
        %v475 = vpop.permute.xlu0 %474
        %476 = vrot.lane.b32.xlu0 %v429, 127
        %v477 = vpop.permute.xlu0 %476
        %494 = vrot.lane.b32.xlu0 %v414, 126
        %v495 = vpop.permute.xlu0 %494
        %496 = vrot.lane.b32.xlu0 %v415, 126
        %v497 = vpop.permute.xlu0 %496
        %498 = vrot.lane.b32.xlu0 %v416, 126
        %v499 = vpop.permute.xlu0 %498
        %500 = vrot.lane.b32.xlu0 %v417, 126
        %v501 = vpop.permute.xlu0 %500
        %502 = vrot.lane.b32.xlu0 %v418, 126
        %v503 = vpop.permute.xlu0 %502
        %504 = vrot.lane.b32.xlu0 %v419, 126
        %v505 = vpop.permute.xlu0 %504
        %506 = vrot.lane.b32.xlu0 %v420, 126
        %v507 = vpop.permute.xlu0 %506
        %508 = vrot.lane.b32.xlu0 %v421, 126
        %v509 = vpop.permute.xlu0 %508
        %510 = vrot.lane.b32.xlu0 %v422, 126
        %v511 = vpop.permute.xlu0 %510
        %512 = vrot.lane.b32.xlu0 %v423, 126
        %v513 = vpop.permute.xlu0 %512
        %514 = vrot.lane.b32.xlu0 %v424, 126
        %v515 = vpop.permute.xlu0 %514
        %516 = vrot.lane.b32.xlu0 %v425, 126
        %v517 = vpop.permute.xlu0 %516
        %518 = vrot.lane.b32.xlu0 %v426, 126
        %v519 = vpop.permute.xlu0 %518
        %520 = vrot.lane.b32.xlu0 %v427, 126
        %v521 = vpop.permute.xlu0 %520
        %522 = vrot.lane.b32.xlu0 %v428, 126
        %v523 = vpop.permute.xlu0 %522
        %524 = vrot.lane.b32.xlu0 %v429, 126
        %v525 = vpop.permute.xlu0 %524
        %542 = vmatpush.msra.mxu0 %v429
        %543 = vmatpush.msra.mxu0 %v428
        %544 = vmatpush.msra.mxu0 %v427
        %545 = vmatpush.msra.mxu0 %v426
        %546 = vmatpush.msra.mxu0 %v425
        %547 = vmatpush.msra.mxu0 %v424
        %548 = vmatpush.msra.mxu0 %v423
        %549 = vmatpush.msra.mxu0 %v422
        %550 = vmatpush.msra.mxu0 %v421
        %551 = vmatpush.msra.mxu0 %v420
        %552 = vmatpush.msra.mxu0 %v419
        %553 = vmatpush.msra.mxu0 %v418
        %554 = vmatpush.msra.mxu0 %v417
        %555 = vmatpush.msra.mxu0 %v416
        %556 = vmatpush.msra.mxu0 %v415
        %557 = vmatpush.msra.mxu0 %v414
        %558 = vmatmul.f32.gmra.mxu0 %v212
        %v559 = vpop.f32.mrf.mxu0
        %v560 = vadd.f32 0.0, %v559
        %561 = vmatmul.f32.gmra.mxu0 %v215
        %v562 = vpop.f32.mrf.mxu0
        %v563 = vadd.f32 0.0, %v562
        %564 = vmatmul.f32.gmra.mxu0 %v218
        %v565 = vpop.f32.mrf.mxu0
        %v566 = vadd.f32 0.0, %v565
        %567 = vmatmul.f32.gmra.mxu0 %v221
        %v568 = vpop.f32.mrf.mxu0
        %v569 = vadd.f32 0.0, %v568
        %570 = vmatmul.f32.gmra.mxu0 %v224
        %v571 = vpop.f32.mrf.mxu0
        %v572 = vadd.f32 0.0, %v571
        %573 = vmatmul.f32.gmra.mxu0 %v227
        %v574 = vpop.f32.mrf.mxu0
        %v575 = vadd.f32 0.0, %v574
        %576 = vmatmul.f32.gmra.mxu0 %v230
        %v577 = vpop.f32.mrf.mxu0
        %v578 = vadd.f32 0.0, %v577
        %579 = vmatmul.f32.gmra.mxu0 %v233
        %v580 = vpop.f32.mrf.mxu0
        %v581 = vadd.f32 0.0, %v580
        %582 = vdwg.mxu0
        %583 = vmatpush.msra.mxu0 %v477
        %584 = vmatpush.msra.mxu0 %v475
        %585 = vmatpush.msra.mxu0 %v473
        %586 = vmatpush.msra.mxu0 %v471
        %587 = vmatpush.msra.mxu0 %v469
        %588 = vmatpush.msra.mxu0 %v467
        %589 = vmatpush.msra.mxu0 %v465
        %590 = vmatpush.msra.mxu0 %v463
        %591 = vmatpush.msra.mxu0 %v461
        %592 = vmatpush.msra.mxu0 %v459
        %593 = vmatpush.msra.mxu0 %v457
        %594 = vmatpush.msra.mxu0 %v455
        %595 = vmatpush.msra.mxu0 %v453
        %596 = vmatpush.msra.mxu0 %v451
        %597 = vmatpush.msra.mxu0 %v449
        %598 = vmatpush.msra.mxu0 %v447
        %599 = vmatmul.f32.gmra.mxu0 %v213
        %v600 = vpop.f32.mrf.mxu0
        %v601 = vadd.f32 %v560, %v600
        %602 = vmatmul.f32.gmra.mxu0 %v216
        %v603 = vpop.f32.mrf.mxu0
        %v604 = vadd.f32 %v563, %v603
        %605 = vmatmul.f32.gmra.mxu0 %v219
        %v606 = vpop.f32.mrf.mxu0
        %v607 = vadd.f32 %v566, %v606
        %608 = vmatmul.f32.gmra.mxu0 %v222
        %v609 = vpop.f32.mrf.mxu0
        %v610 = vadd.f32 %v569, %v609
        %611 = vmatmul.f32.gmra.mxu0 %v225
        %v612 = vpop.f32.mrf.mxu0
        %v613 = vadd.f32 %v572, %v612
        %614 = vmatmul.f32.gmra.mxu0 %v228
        %v615 = vpop.f32.mrf.mxu0
        %v616 = vadd.f32 %v575, %v615
        %617 = vmatmul.f32.gmra.mxu0 %v231
        %v618 = vpop.f32.mrf.mxu0
        %v619 = vadd.f32 %v578, %v618
        %620 = vmatmul.f32.gmra.mxu0 %v234
        %v621 = vpop.f32.mrf.mxu0
        %v622 = vadd.f32 %v581, %v621
        %623 = vdwg.mxu0
        %624 = vmatpush.msra.mxu0 %v525
        %625 = vmatpush.msra.mxu0 %v523
        %626 = vmatpush.msra.mxu0 %v521
        %627 = vmatpush.msra.mxu0 %v519
        %628 = vmatpush.msra.mxu0 %v517
        %629 = vmatpush.msra.mxu0 %v515
        %630 = vmatpush.msra.mxu0 %v513
        %631 = vmatpush.msra.mxu0 %v511
        %632 = vmatpush.msra.mxu0 %v509
        %633 = vmatpush.msra.mxu0 %v507
        %634 = vmatpush.msra.mxu0 %v505
        %635 = vmatpush.msra.mxu0 %v503
        %636 = vmatpush.msra.mxu0 %v501
        %637 = vmatpush.msra.mxu0 %v499
        %638 = vmatpush.msra.mxu0 %v497
        %639 = vmatpush.msra.mxu0 %v495
        %640 = vmatmul.f32.gmra.mxu0 %v214
        %v641 = vpop.f32.mrf.mxu0
        %v642 = vadd.f32 %v601, %v641
        %643 = vmatmul.f32.gmra.mxu0 %v217
        %v644 = vpop.f32.mrf.mxu0
        %v645 = vadd.f32 %v604, %v644
        %646 = vmatmul.f32.gmra.mxu0 %v220
        %v647 = vpop.f32.mrf.mxu0
        %v648 = vadd.f32 %v607, %v647
        %649 = vmatmul.f32.gmra.mxu0 %v223
        %v650 = vpop.f32.mrf.mxu0
        %v651 = vadd.f32 %v610, %v650
        %652 = vmatmul.f32.gmra.mxu0 %v226
        %v653 = vpop.f32.mrf.mxu0
        %v654 = vadd.f32 %v613, %v653
        %655 = vmatmul.f32.gmra.mxu0 %v229
        %v656 = vpop.f32.mrf.mxu0
        %v657 = vadd.f32 %v616, %v656
        %658 = vmatmul.f32.gmra.mxu0 %v232
        %v659 = vpop.f32.mrf.mxu0
        %v660 = vadd.f32 %v619, %v659
        %661 = vmatmul.f32.gmra.mxu0 %v235
        %v662 = vpop.f32.mrf.mxu0
        %v663 = vadd.f32 %v622, %v662
        %664 = vdwg.mxu0
        %v665 = vmax.f32 %v642, 0.0
        %v666 = vmax.f32 %v645, 0.0
        %v667 = vmax.f32 %v648, 0.0
        %v668 = vmax.f32 %v651, 0.0
        %v669 = vmax.f32 %v654, 0.0
        %v670 = vmax.f32 %v657, 0.0
        %v671 = vmax.f32 %v660, 0.0
        %v672 = vmax.f32 %v663, 0.0
        %v673 = vld [vmem:[%s2] sm:$0xff]
        %v674 = vld [vmem:[%s2 + $0x8] sm:$0xff]
        %v675 = vld [vmem:[%s2 + $0x10] sm:$0xff]
        %v676 = vld [vmem:[%s2 + $0x18] sm:$0xff]
        %v677 = vld [vmem:[%s2 + $0x20] sm:$0xff]
        %v678 = vld [vmem:[%s2 + $0x28] sm:$0xff]
        %v679 = vld [vmem:[%s2 + $0x30] sm:$0xff]
        %v680 = vld [vmem:[%s2 + $0x38] sm:$0xff]
        %689 = vrot.lane.b32.xlu0 %v665, 127
        %v690 = vpop.permute.xlu0 %689
        %691 = vrot.lane.b32.xlu0 %v666, 127
        %v692 = vpop.permute.xlu0 %691
        %693 = vrot.lane.b32.xlu0 %v667, 127
        %v694 = vpop.permute.xlu0 %693
        %695 = vrot.lane.b32.xlu0 %v668, 127
        %v696 = vpop.permute.xlu0 %695
        %697 = vrot.lane.b32.xlu0 %v669, 127
        %v698 = vpop.permute.xlu0 %697
        %699 = vrot.lane.b32.xlu0 %v670, 127
        %v700 = vpop.permute.xlu0 %699
        %701 = vrot.lane.b32.xlu0 %v671, 127
        %v702 = vpop.permute.xlu0 %701
        %703 = vrot.lane.b32.xlu0 %v672, 127
        %v704 = vpop.permute.xlu0 %703
        %713 = vrot.lane.b32.xlu0 %v665, 1
        %v714 = vpop.permute.xlu0 %713
        %715 = vrot.lane.b32.xlu0 %v666, 1
        %v716 = vpop.permute.xlu0 %715
        %717 = vrot.lane.b32.xlu0 %v667, 1
        %v718 = vpop.permute.xlu0 %717
        %719 = vrot.lane.b32.xlu0 %v668, 1
        %v720 = vpop.permute.xlu0 %719
        %721 = vrot.lane.b32.xlu0 %v669, 1
        %v722 = vpop.permute.xlu0 %721
        %723 = vrot.lane.b32.xlu0 %v670, 1
        %v724 = vpop.permute.xlu0 %723
        %725 = vrot.lane.b32.xlu0 %v671, 1
        %v726 = vpop.permute.xlu0 %725
        %727 = vrot.lane.b32.xlu0 %v672, 1
        %v728 = vpop.permute.xlu0 %727
        %737 = vrot.lane.b32.xlu0 %v665, 3
        %v738 = vpop.permute.xlu0 %737
        %739 = vrot.lane.b32.xlu0 %v666, 3
        %v740 = vpop.permute.xlu0 %739
        %741 = vrot.lane.b32.xlu0 %v667, 3
        %v742 = vpop.permute.xlu0 %741
        %743 = vrot.lane.b32.xlu0 %v668, 3
        %v744 = vpop.permute.xlu0 %743
        %745 = vrot.lane.b32.xlu0 %v669, 3
        %v746 = vpop.permute.xlu0 %745
        %747 = vrot.lane.b32.xlu0 %v670, 3
        %v748 = vpop.permute.xlu0 %747
        %749 = vrot.lane.b32.xlu0 %v671, 3
        %v750 = vpop.permute.xlu0 %749
        %751 = vrot.lane.b32.xlu0 %v672, 3
        %v752 = vpop.permute.xlu0 %751
        %v761 = vsel %vm396, %v690, %v714
        %v762 = vsel %vm396, %v692, %v716
        %v763 = vsel %vm396, %v694, %v718
        %v764 = vsel %vm396, %v696, %v720
        %v765 = vsel %vm396, %v698, %v722
        %v766 = vsel %vm396, %v700, %v724
        %v767 = vsel %vm396, %v702, %v726
        %v768 = vsel %vm396, %v704, %v728
        %v769 = vsel %vm413, %v761, %v738
        %v770 = vsel %vm413, %v762, %v740
        %v771 = vsel %vm413, %v763, %v742
        %v772 = vsel %vm413, %v764, %v744
        %v773 = vsel %vm413, %v765, %v746
        %v774 = vsel %vm413, %v766, %v748
        %v775 = vsel %vm413, %v767, %v750
        %v776 = vsel %vm413, %v768, %v752
        %785 = vrot.lane.b32.xlu0 %v769, 127
        %v786 = vpop.permute.xlu0 %785
        %787 = vrot.lane.b32.xlu0 %v770, 127
        %v788 = vpop.permute.xlu0 %787
        %789 = vrot.lane.b32.xlu0 %v771, 127
        %v790 = vpop.permute.xlu0 %789
        %791 = vrot.lane.b32.xlu0 %v772, 127
        %v792 = vpop.permute.xlu0 %791
        %793 = vrot.lane.b32.xlu0 %v773, 127
        %v794 = vpop.permute.xlu0 %793
        %795 = vrot.lane.b32.xlu0 %v774, 127
        %v796 = vpop.permute.xlu0 %795
        %797 = vrot.lane.b32.xlu0 %v775, 127
        %v798 = vpop.permute.xlu0 %797
        %799 = vrot.lane.b32.xlu0 %v776, 127
        %v800 = vpop.permute.xlu0 %799
        %809 = vrot.lane.b32.xlu0 %v769, 126
        %v810 = vpop.permute.xlu0 %809
        %811 = vrot.lane.b32.xlu0 %v770, 126
        %v812 = vpop.permute.xlu0 %811
        %813 = vrot.lane.b32.xlu0 %v771, 126
        %v814 = vpop.permute.xlu0 %813
        %815 = vrot.lane.b32.xlu0 %v772, 126
        %v816 = vpop.permute.xlu0 %815
        %817 = vrot.lane.b32.xlu0 %v773, 126
        %v818 = vpop.permute.xlu0 %817
        %819 = vrot.lane.b32.xlu0 %v774, 126
        %v820 = vpop.permute.xlu0 %819
        %821 = vrot.lane.b32.xlu0 %v775, 126
        %v822 = vpop.permute.xlu0 %821
        %823 = vrot.lane.b32.xlu0 %v776, 126
        %v824 = vpop.permute.xlu0 %823
        %vm833 = vcmask 523264
        %v835 = vsel %vm833, %v674, 0
        %v838 = vsel %vm833, %v676, 0
        %v841 = vsel %vm833, %v678, 0
        %v844 = vsel %vm833, %v680, 0
        %846 = vmatpush.msra.mxu0 %v800
        %847 = vmatpush.msra.mxu0 %v798
        %848 = vmatpush.msra.mxu0 %v796
        %849 = vmatpush.msra.mxu0 %v794
        %850 = vmatpush.msra.mxu0 %v792
        %851 = vmatpush.msra.mxu0 %v790
        %852 = vmatpush.msra.mxu0 %v788
        %853 = vmatpush.msra.mxu0 %v786
        %854 = vmatpush.msra.mxu0 %v776
        %855 = vmatpush.msra.mxu0 %v775
        %856 = vmatpush.msra.mxu0 %v774
        %857 = vmatpush.msra.mxu0 %v773
        %858 = vmatpush.msra.mxu0 %v772
        %859 = vmatpush.msra.mxu0 %v771
        %860 = vmatpush.msra.mxu0 %v770
        %861 = vmatpush.msra.mxu0 %v769
        %862 = vmatmul.f32.gmra.mxu0 %v673
        %v863 = vpop.f32.mrf.mxu0
        %v864 = vadd.f32 0.0, %v863
        %865 = vmatmul.f32.gmra.mxu0 %v675
        %v866 = vpop.f32.mrf.mxu0
        %v867 = vadd.f32 0.0, %v866
        %868 = vmatmul.f32.gmra.mxu0 %v677
        %v869 = vpop.f32.mrf.mxu0
        %v870 = vadd.f32 0.0, %v869
        %871 = vmatmul.f32.gmra.mxu0 %v679
        %v872 = vpop.f32.mrf.mxu0
        %v873 = vadd.f32 0.0, %v872
        %874 = vdwg.mxu0
        %875 = vmatpush.msra.mxu0 0.0
        %876 = vmatpush.msra.mxu0 0.0
        %877 = vmatpush.msra.mxu0 0.0
        %878 = vmatpush.msra.mxu0 0.0
        %879 = vmatpush.msra.mxu0 0.0
        %880 = vmatpush.msra.mxu0 0.0
        %881 = vmatpush.msra.mxu0 0.0
        %882 = vmatpush.msra.mxu0 0.0
        %883 = vmatpush.msra.mxu0 %v824
        %884 = vmatpush.msra.mxu0 %v822
        %885 = vmatpush.msra.mxu0 %v820
        %886 = vmatpush.msra.mxu0 %v818
        %887 = vmatpush.msra.mxu0 %v816
        %888 = vmatpush.msra.mxu0 %v814
        %889 = vmatpush.msra.mxu0 %v812
        %890 = vmatpush.msra.mxu0 %v810
        %891 = vmatmul.f32.gmra.mxu0 %v835
        %v892 = vpop.f32.mrf.mxu0
        %v893 = vadd.f32 %v864, %v892
        %894 = vmatmul.f32.gmra.mxu0 %v838
        %v895 = vpop.f32.mrf.mxu0
        %v896 = vadd.f32 %v867, %v895
        %897 = vmatmul.f32.gmra.mxu0 %v841
        %v898 = vpop.f32.mrf.mxu0
        %v899 = vadd.f32 %v870, %v898
        %900 = vmatmul.f32.gmra.mxu0 %v844
        %v901 = vpop.f32.mrf.mxu0
        %v902 = vadd.f32 %v873, %v901
        %903 = vdwg.mxu0
        %v904 = vmax.f32 %v893, 0.0
        %v905 = vmax.f32 %v896, 0.0
        %v906 = vmax.f32 %v899, 0.0
        %v907 = vmax.f32 %v902, 0.0
        %v908 = vld [vmem:[%s3] sm:$0xf]
        %913 = vrot.lane.b32.xlu0 %v904, 127
        %v914 = vpop.permute.xlu0 %913
        %915 = vrot.lane.b32.xlu0 %v905, 127
        %v916 = vpop.permute.xlu0 %915
        %917 = vrot.lane.b32.xlu0 %v906, 127
        %v918 = vpop.permute.xlu0 %917
        %919 = vrot.lane.b32.xlu0 %v907, 127
        %v920 = vpop.permute.xlu0 %919
        %925 = vrot.lane.b32.xlu0 %v904, 1
        %v926 = vpop.permute.xlu0 %925
        %927 = vrot.lane.b32.xlu0 %v905, 1
        %v928 = vpop.permute.xlu0 %927
        %929 = vrot.lane.b32.xlu0 %v906, 1
        %v930 = vpop.permute.xlu0 %929
        %931 = vrot.lane.b32.xlu0 %v907, 1
        %v932 = vpop.permute.xlu0 %931
        %937 = vrot.lane.b32.xlu0 %v904, 3
        %v938 = vpop.permute.xlu0 %937
        %939 = vrot.lane.b32.xlu0 %v905, 3
        %v940 = vpop.permute.xlu0 %939
        %941 = vrot.lane.b32.xlu0 %v906, 3
        %v942 = vpop.permute.xlu0 %941
        %943 = vrot.lane.b32.xlu0 %v907, 3
        %v944 = vpop.permute.xlu0 %943
        %v949 = vsel %vm396, %v914, %v926
        %v950 = vsel %vm396, %v916, %v928
        %v951 = vsel %vm396, %v918, %v930
        %v952 = vsel %vm396, %v920, %v932
        %v953 = vsel %vm413, %v949, %v938
        %v954 = vsel %vm413, %v950, %v940
        %v955 = vsel %vm413, %v951, %v942
        %v956 = vsel %vm413, %v952, %v944
        %961 = vrot.lane.b32.xlu0 %v953, 127
        %v962 = vpop.permute.xlu0 %961
        %963 = vrot.lane.b32.xlu0 %v954, 127
        %v964 = vpop.permute.xlu0 %963
        %965 = vrot.lane.b32.xlu0 %v955, 127
        %v966 = vpop.permute.xlu0 %965
        %967 = vrot.lane.b32.xlu0 %v956, 127
        %v968 = vpop.permute.xlu0 %967
        %973 = vrot.lane.b32.xlu0 %v953, 126
        %v974 = vpop.permute.xlu0 %973
        %975 = vrot.lane.b32.xlu0 %v954, 126
        %v976 = vpop.permute.xlu0 %975
        %977 = vrot.lane.b32.xlu0 %v955, 126
        %v978 = vpop.permute.xlu0 %977
        %979 = vrot.lane.b32.xlu0 %v956, 126
        %v980 = vpop.permute.xlu0 %979
        %vm985 = vcmask 785408
        %v987 = vsel %vm985, %v908, 0
        %989 = vmatpush.msra.mxu0 0.0
        %990 = vmatpush.msra.mxu0 0.0
        %991 = vmatpush.msra.mxu0 0.0
        %992 = vmatpush.msra.mxu0 0.0
        %993 = vmatpush.msra.mxu0 %v980
        %994 = vmatpush.msra.mxu0 %v978
        %995 = vmatpush.msra.mxu0 %v976
        %996 = vmatpush.msra.mxu0 %v974
        %997 = vmatpush.msra.mxu0 %v968
        %998 = vmatpush.msra.mxu0 %v966
        %999 = vmatpush.msra.mxu0 %v964
        %1000 = vmatpush.msra.mxu0 %v962
        %1001 = vmatpush.msra.mxu0 %v956
        %1002 = vmatpush.msra.mxu0 %v955
        %1003 = vmatpush.msra.mxu0 %v954
        %1004 = vmatpush.msra.mxu0 %v953
        %1005 = vmatmul.f32.gmra.mxu0 %v987
        %v1006 = vpop.f32.mrf.mxu0
        %v1007 = vadd.f32 0.0, %v1006
        %1008 = vdwg.mxu0
        %v1009 = vmax.f32 %v1007, 0.0
        %vm1010 = vcmask 125952
        %1011 = vst.msk [vmem:[%s190] sm:$0xf] %vm1010, %v1009
        %s1012 = sand.u32 %s115, 1
        %s1013 = scalar_lea.sflag [#allocation3], %s1012
        %s1014 = sand.u32 %s115, 1
        %s1015 = smul.addr %s1014, 4
        %s1016 = scalar_lea.vmem [#allocation2], %s1015
        // Predicated region
        $region37: #{decoder_forward.1} parent=35 // pred_check
          %p1017 = pneg %p125
        $region38: #{decoder_forward.1} parent=35 // pred_check_branch
          %1019 = sbr.rel (%p1017) target = $region40
        $region39: #{decoder_forward.1} parent=35 // pred_region
          %1021 = vsyncadd %s1013, 0
          %s1022 = smul.addr %s18, 4
          %s1023 = scalar_lea.hbm %s4, %s1022
          %s1025 = sshll.u32 %s1016, 4
          %s1026 = int_to_ptr.vmem [resolvable:$true] %s1025
          %s1027 = sshll.u32 %s1023, 4
          %s1028 = int_to_ptr.hbm [resolvable:$true] %s1027
          %1030 = dma.vmem_to_hbm [thread:$0]  %s1026, 64, %s1028, %s1013
        $region40: #{decoder_forward.1} parent=35 // pred_fallthru
          _
      $region36: #{decoder_forward.1} parent=5 // pred_fallthru
        _
      %p1031 = scmp.le.s32.totalorder 2, %s13
      // Predicated region
      $region41: #{decoder_forward.1} parent=5 // pred_check
        %p1032 = pneg %p1031
      $region42: #{decoder_forward.1} parent=5 // pred_check_branch
        %1034 = sbr.rel (%p1032) target = $region44
      $region43: #{decoder_forward.1} parent=5 // pred_region
        %s1035 = ssub.s32 %s13, 2
        // Predicated region
        $region45: #{decoder_forward.1} parent=43 // pred_check
          %p1036 = pneg %p131
        $region46: #{decoder_forward.1} parent=43 // pred_check_branch
          %1038 = sbr.rel (%p1036) target = $region48
        $region47: #{decoder_forward.1} parent=43 // pred_region
          %s1039 = sand.u32 %s116, 1
          %s1040 = scalar_lea.sflag [#allocation3], %s1039
          %s1041 = sand.u32 %s116, 1
          %s1042 = smul.addr %s1041, 4
          %s1043 = scalar_lea.vmem [#allocation2], %s1042
          %1045 = dma.done %s1040, 64
        $region48: #{decoder_forward.1} parent=43 // pred_fallthru
          _
      $region44: #{decoder_forward.1} parent=5 // pred_fallthru
        _
    $region6: #{decoder_forward.1} parent=1 // loop_footer
      %s17 = sadd.s32 1, %s13
    $region7: #{decoder_forward.1} parent=1 // loop_footer_branch
      %12 = sbr.rel target = $region3
    $region8: #{decoder_forward.1} parent=1 // loop_exit
      _
    %1046 = vsyncpa [#allocation3], 1
    %s1047 = scalar_lea.sflag [#allocation3], 1
    %1048 = vsyncpa %s1047, 1

</llo_original>
